<compile_context>
chip_gen: v7x
topology: tpu7x:2x2x1
jax: 0.10.0
libtpu: 0.0.40
codegen_flags: <defaults>
</compile_context>

<pallas_src>
import functools

import jax
import jax.numpy as jnp
from jax import lax
from jax.experimental import pallas as pl
from jax.experimental.pallas import tpu as pltpu


def _round_up(n, m):
    return ((n + m - 1) // m) * m


def _policy_kernel(x_ref, w1_ref, b1_ref, wh_ref, bh_ref, out_ref, *, compute_dtype):
    # x tile stays f32 in HBM/VMEM; cast (if requested) right before the MXU.
    x = x_ref[...]
    if x.dtype != compute_dtype:
        x = x.astype(compute_dtype)

    # hidden = relu(x @ W1 + b1); accumulate and do bias/ReLU in f32.
    h = jnp.dot(x, w1_ref[...], preferred_element_type=jnp.float32)
    h = jnp.maximum(h + b1_ref[...], 0.0)

    # Fused heads, lane-dense: (H, 2) x (tile_b, H) contracted over H -> (2, tile_b).
    out = lax.dot_general(
        wh_ref[...], h.astype(wh_ref.dtype),
        dimension_numbers=(((0,), (1,)), ((), ())),
        preferred_element_type=jnp.float32,
    )
    out_ref[...] = (out + bh_ref[...]).astype(out_ref.dtype)


def policy2_forward(x, w1, b1, wm, bm, wv, bv, *,
                    block_b=2048, compute_dtype=jnp.float32):
    """x: (B, 30) float32.

    Weights are stored transposed relative to torch, i.e. (in, out).
    Returns (action_mean (B, 1), state_value (B, 1)) in float32.
    compute_dtype controls the MXU input dtype (jnp.bfloat16 on v6e/v7x);
    x is cast inside the kernel, so HBM traffic for x is unchanged.
    """
    B, F = x.shape
    H = w1.shape[1]

    # Fused heads: (H, 2) weight, (2, 1) bias (bias broadcast over lanes).
    w_heads = jnp.concatenate([wm, wv], axis=1).astype(compute_dtype)   # (H, 2)
    b_heads = jnp.concatenate([bm, bv], axis=0).astype(jnp.float32)     # (2, 1)

    w1d = w1.astype(compute_dtype)
    b1d = b1.astype(jnp.float32)

    # Batch tiling: tile_b is always a multiple of 128 (lane-dense output tile).
    block_b = max(128, _round_up(block_b, 128))
    tile_full = _round_up(B, 128)
    tile_b = min(block_b, tile_full)
    if tile_b >= tile_full and B > 128:
        # Split into >= 2 grid steps so "parallel" shards across v7x's 2 TCs.
        tile_b = min(tile_b, max(128, _round_up((B + 1) // 2, 128)))
    grid_b = pl.cdiv(B, tile_b)   # partial last block is masked on writeback

    bytes_x = B * F * x.dtype.itemsize
    bytes_w = (F * H + H + H * 2 + 2) * 4
    bytes_out = 2 * B * 4
    cost = pl.CostEstimate(
        flops=2 * B * F * H + 2 * B * H * 2,
        transcendentals=0,
        bytes_accessed=bytes_x + bytes_w + bytes_out,
    )

    out = pl.pallas_call(
        functools.partial(_policy_kernel, compute_dtype=compute_dtype),
        out_shape=jax.ShapeDtypeStruct((2, B), jnp.float32),
        grid_spec=pltpu.PrefetchScalarGridSpec(
            num_scalar_prefetch=0,
            grid=(grid_b,),
            in_specs=[
                pl.BlockSpec((tile_b, F), lambda i: (i, 0)),   # x tile (pipelined)
                pl.BlockSpec((F, H), lambda i: (0, 0)),        # W1 (resident)
                pl.BlockSpec((1, H), lambda i: (0, 0)),        # b1 (resident)
                pl.BlockSpec((H, 2), lambda i: (0, 0)),        # fused head weights
                pl.BlockSpec((2, 1), lambda i: (0, 0)),        # fused head bias
            ],
            out_specs=pl.BlockSpec((2, tile_b), lambda i: (0, i)),  # lane-dense
        ),
        compiler_params=pltpu.CompilerParams(
            dimension_semantics=("parallel",),
            vmem_limit_bytes=32 * 1024 * 1024,
        ),
        cost_estimate=cost,
    )(x, w1d, b1d, w_heads, b_heads)

    # Split fused heads back into (B, 1) mean / value (tiny XLA slices).
    return out[0, :, None], out[1, :, None]


def _init_params(key):
    """Deterministic synthetic parameter init (shapes from Policy2.__init__)."""
    ks = jax.random.split(key, 6)
    # stored as (in_features, out_features) — transpose of torch's layout
    w1 = jax.random.normal(ks[0], (30, 128), jnp.float32) * (1.0 / jnp.sqrt(30.0))
    b1 = jax.random.normal(ks[1], (1, 128), jnp.float32) * 0.01
    wm = jax.random.normal(ks[2], (128, 1), jnp.float32) * (1.0 / jnp.sqrt(128.0))
    bm = jax.random.normal(ks[3], (1, 1), jnp.float32) * 0.01
    wv = jax.random.normal(ks[4], (128, 1), jnp.float32) * (1.0 / jnp.sqrt(128.0))
    bv = jax.random.normal(ks[5], (1, 1), jnp.float32) * 0.01
    return w1, b1, wm, bm, wv, bv


def _reference(x, w1, b1, wm, bm, wv, bv):
    h = jnp.maximum(x @ w1 + b1, 0.0)
    return h @ wm + bm, h @ wv + bv


if __name__ == "__main__":
    key = jax.random.PRNGKey(0)
    k_x, k_p = jax.random.split(key)

    B = 8
    x = jax.random.normal(k_x, (B, 30), jnp.float32)
    params = _init_params(k_p)
    ref_mean, ref_value = _reference(x, *params)

    # f32 path (default): tight correctness check; exercises partial (B=8 < 128) block.
    action_mean, state_value = policy2_forward(x, *params)
    jax.block_until_ready((action_mean, state_value))
    assert action_mean.shape == (B, 1) and state_value.shape == (B, 1)
    assert jnp.allclose(action_mean, ref_mean, atol=1e-5, rtol=1e-5)
    assert jnp.allclose(state_value, ref_value, atol=1e-5, rtol=1e-5)

    # bf16 MXU-input path (v6e/v7x fast path): looser check.
    bf_mean, bf_value = policy2_forward(x, *params, compute_dtype=jnp.bfloat16)
    jax.block_until_ready((bf_mean, bf_value))
    assert jnp.allclose(bf_mean, ref_mean, atol=5e-2, rtol=5e-2)
    assert jnp.allclose(bf_value, ref_value, atol=5e-2, rtol=5e-2)

    # Non-128-divisible batch: exercises multi-step grid + masked last block,
    # and the >=2-step split for v7x TC sharding.
    B2 = 1000
    x2 = jax.random.normal(k_x, (B2, 30), jnp.float32)
    m2, v2 = policy2_forward(x2, *params, block_b=2048)
    jax.block_until_ready((m2, v2))
    r2m, r2v = _reference(x2, *params)
    assert m2.shape == (B2, 1) and v2.shape == (B2, 1)
    assert jnp.allclose(m2, r2m, atol=1e-5, rtol=1e-5)
    assert jnp.allclose(v2, r2v, atol=1e-5, rtol=1e-5)

    print("KERNEL_OK")
</pallas_src>

<mosaic_0001>
module attributes {stable_mosaic.version = 11 : i64} {
  func.func @_policy_kernel(%arg0: i32, %arg1: memref<128x30xf32, #tpu.memory_space<vmem>>, %arg2: memref<30x128xf32, #tpu.memory_space<vmem>>, %arg3: memref<1x128xf32, #tpu.memory_space<vmem>>, %arg4: memref<128x2xf32, #tpu.memory_space<vmem>>, %arg5: memref<2x1xf32, #tpu.memory_space<vmem>>, %arg6: memref<2x128xf32, #tpu.memory_space<vmem>>) attributes {dimension_semantics = [#tpu.dimension_semantics<parallel>], iteration_bounds = array<i64: 1>, scalar_prefetch = 0 : i64, scratch_operands = 0 : i64, tpu.core_type = #tpu.core_type<tc>, window_params = [{transform_indices = @transform_0, window_bounds = array<i64: 128, 30>}, {pipeline_mode = #tpu.pipeline_mode<synchronous>, transform_indices = @transform_1, window_bounds = array<i64: 30, 128>}, {pipeline_mode = #tpu.pipeline_mode<synchronous>, transform_indices = @transform_2, window_bounds = array<i64: 1, 128>}, {pipeline_mode = #tpu.pipeline_mode<synchronous>, transform_indices = @transform_3, window_bounds = array<i64: 128, 2>}, {pipeline_mode = #tpu.pipeline_mode<synchronous>, transform_indices = @transform_4, window_bounds = array<i64: 2, 1>}, {transform_indices = @transform_5, window_bounds = array<i64: 2, 128>}]} {
    %c0 = arith.constant 0 : index
    %c0_0 = arith.constant 0 : index
    %0 = vector.load %arg1[%c0, %c0_0] : memref<128x30xf32, #tpu.memory_space<vmem>>, vector<128x30xf32>
    %c0_1 = arith.constant 0 : index
    %c0_2 = arith.constant 0 : index
    %1 = vector.load %arg2[%c0_1, %c0_2] : memref<30x128xf32, #tpu.memory_space<vmem>>, vector<30x128xf32>
    %cst = arith.constant dense<0.000000e+00> : vector<128x128xf32>
    %2 = tpu.matmul %0, %1, %cst {dimension_numbers = #tpu.dot_dimension_numbers<[1], [0], [0], [1], [0, 0, 1, 1], [], []>} : vector<128x30xf32>, vector<30x128xf32>, vector<128x128xf32> -> vector<128x128xf32>
    %c0_3 = arith.constant 0 : index
    %c0_4 = arith.constant 0 : index
    %3 = vector.load %arg3[%c0_3, %c0_4] : memref<1x128xf32, #tpu.memory_space<vmem>>, vector<1x128xf32>
    %4 = vector.broadcast %3 : vector<1x128xf32> to vector<128x128xf32>
    %5 = arith.addf %2, %4 : vector<128x128xf32>
    %cst_5 = arith.constant 0.000000e+00 : f32
    %6 = vector.broadcast %cst_5 : f32 to vector<128x128xf32>
    %7 = arith.maximumf %5, %6 : vector<128x128xf32>
    %c0_6 = arith.constant 0 : index
    %c0_7 = arith.constant 0 : index
    %8 = vector.load %arg4[%c0_6, %c0_7] : memref<128x2xf32, #tpu.memory_space<vmem>>, vector<128x2xf32>
    %cst_8 = arith.constant dense<0.000000e+00> : vector<2x128xf32>
    %9 = tpu.matmul %8, %7, %cst_8 {dimension_numbers = #tpu.dot_dimension_numbers<[0], [1], [1], [0], [0, 1, 1, 0], [], []>} : vector<128x2xf32>, vector<128x128xf32>, vector<2x128xf32> -> vector<2x128xf32>
    %c0_9 = arith.constant 0 : index
    %c0_10 = arith.constant 0 : index
    %10 = vector.load %arg5[%c0_9, %c0_10] : memref<2x1xf32, #tpu.memory_space<vmem>>, vector<2x1xf32>
    %11 = vector.broadcast %10 : vector<2x1xf32> to vector<2x128xf32>
    %12 = arith.addf %9, %11 : vector<2x128xf32>
    %c0_11 = arith.constant 0 : index
    %c0_12 = arith.constant 0 : index
    %13 = vector.load %arg6[%c0_11, %c0_12] : memref<2x128xf32, #tpu.memory_space<vmem>>, vector<2x128xf32>
    tpu.vector_store %arg6[%c0_11, %c0_12], %12 {strides = array<i32>} : memref<2x128xf32, #tpu.memory_space<vmem>>, vector<2x128xf32>,
    return
  }
  func.func @transform_0(%arg0: i32) -> (i32, i32) {
    %c0_i32 = arith.constant 0 : i32
    %c0_i32_0 = arith.constant 0 : i32
    return %arg0, %c0_i32 : i32, i32
  }
  func.func @transform_1(%arg0: i32) -> (i32, i32) {
    %c0_i32 = arith.constant 0 : i32
    %c0_i32_0 = arith.constant 0 : i32
    %c0_i32_1 = arith.constant 0 : i32
    return %c0_i32, %c0_i32_0 : i32, i32
  }
  func.func @transform_2(%arg0: i32) -> (i32, i32) {
    %c0_i32 = arith.constant 0 : i32
    %c0_i32_0 = arith.constant 0 : i32
    %c0_i32_1 = arith.constant 0 : i32
    return %c0_i32, %c0_i32_0 : i32, i32
  }
  func.func @transform_3(%arg0: i32) -> (i32, i32) {
    %c0_i32 = arith.constant 0 : i32
    %c0_i32_0 = arith.constant 0 : i32
    %c0_i32_1 = arith.constant 0 : i32
    return %c0_i32, %c0_i32_0 : i32, i32
  }
  func.func @transform_4(%arg0: i32) -> (i32, i32) {
    %c0_i32 = arith.constant 0 : i32
    %c0_i32_0 = arith.constant 0 : i32
    %c0_i32_1 = arith.constant 0 : i32
    return %c0_i32, %c0_i32_0 : i32, i32
  }
  func.func @transform_5(%arg0: i32) -> (i32, i32) {
    %c0_i32 = arith.constant 0 : i32
    %c0_i32_0 = arith.constant 0 : i32
    return %c0_i32, %arg0 : i32, i32
  }
}

</mosaic_0001>

<llo_original>
// kernel: tpu_custom_call.1
$region0: #{tpu_custom_call.1}
  #allocation0 [shape = 'u32[]', space=smem, size = 0x4, offset = 0x4, fixed_abs, tag = 'smem constant byte address 0x4 - core index']
  #allocation1 [shape = 'u32[144,128]{1,0:T(1,128)}', space=vmem, size = 0x12000, scoped, tag = 'internal scratch']
  %s0 = inlined_call_operand.vmem [shape: f32[8,30], index: 0, kind: input, shape index: {}]
  %s1 = inlined_call_operand.vmem [shape: f32[30,128], index: 1, kind: input, shape index: {}]
  %s2 = inlined_call_operand.vmem [shape: f32[1,128], index: 2, kind: input, shape index: {}]
  %s3 = inlined_call_operand.vmem [shape: f32[128,2], index: 3, kind: input, shape index: {}]
  %s4 = inlined_call_operand.vmem [shape: f32[2,1], index: 4, kind: input, shape index: {}]
  %s5 = inlined_call_operand.hbm [shape: f32[2,8], index: 5, kind: output, shape index: {}]
  %s6 = sld [smem:[#allocation0]]
  $region30: #{tpu_custom_call.1} parent=0
    _
  %s8 = ssub.s32 1, %s6
  %s9 = scalar_select 0, %s8, %s6
  $region1: #{tpu_custom_call.1} parent=0
    #allocation2 [shape = 'u8[1024]{0}', space=vmem, size = 0x400, scoped, tag = 'output window, operand 0, single buffered']
    #allocation3 [shape = 's32[1]{0}', space=sflag, size = 0x4, scoped, tag = 'scoped memory for tpu_custom_call.1']
    %10 = vsyncpa [#allocation3], 0
    // Predicated region
    $region2: #{tpu_custom_call.1} parent=1 // pred_check
      _
    $region3: #{tpu_custom_call.1} parent=1 // pred_check_branch
      %12 = sbr.rel (0) target = $region5
    $region4: #{tpu_custom_call.1} parent=1 // pred_region
      _
    $region5: #{tpu_custom_call.1} parent=1 // pred_fallthru
      _
    // Predicated region
    $region6: #{tpu_custom_call.1} parent=1 // pred_check
      _
    $region7: #{tpu_custom_call.1} parent=1 // pred_check_branch
      %14 = sbr.rel (0) target = $region9
    $region8: #{tpu_custom_call.1} parent=1 // pred_region
      _
    $region9: #{tpu_custom_call.1} parent=1 // pred_fallthru
      _
    // Predicated region
    $region10: #{tpu_custom_call.1} parent=1 // pred_check
      _
    $region11: #{tpu_custom_call.1} parent=1 // pred_check_branch
      %16 = sbr.rel (0) target = $region13
    $region12: #{tpu_custom_call.1} parent=1 // pred_region
      _
    $region13: #{tpu_custom_call.1} parent=1 // pred_fallthru
      _
    // Predicated region
    $region14: #{tpu_custom_call.1} parent=1 // pred_check
      _
    $region15: #{tpu_custom_call.1} parent=1 // pred_check_branch
      %18 = sbr.rel (0) target = $region17
    $region16: #{tpu_custom_call.1} parent=1 // pred_region
      _
    $region17: #{tpu_custom_call.1} parent=1 // pred_fallthru
      _
    // Predicated region
    $region18: #{tpu_custom_call.1} parent=1 // pred_check
      _
    $region19: #{tpu_custom_call.1} parent=1 // pred_check_branch
      %20 = sbr.rel (0) target = $region21
    $region20: #{tpu_custom_call.1} parent=1 // pred_region
      _
    $region21: #{tpu_custom_call.1} parent=1 // pred_fallthru
      _
    %v21 = vld [vmem:[%s0] sm:$0xff]
    %v22 = vld [vmem:[%s0 + $0x8] sm:$0xff]
    %v23 = vld [vmem:[%s0 + $0x10] sm:$0xff]
    %v24 = vld [vmem:[%s0 + $0x18] sm:$0xff]
    %v25 = vld [vmem:[%s0 + $0x20] sm:$0xff]
    %v26 = vld [vmem:[%s0 + $0x28] sm:$0xff]
    %v27 = vld [vmem:[%s0 + $0x30] sm:$0xff]
    %v28 = vld [vmem:[%s0 + $0x38] sm:$0xff]
    %v29 = vld [vmem:[%s0 + $0x40] sm:$0xff]
    %v30 = vld [vmem:[%s0 + $0x48] sm:$0xff]
    %v31 = vld [vmem:[%s0 + $0x50] sm:$0xff]
    %v32 = vld [vmem:[%s0 + $0x58] sm:$0xff]
    %v33 = vld [vmem:[%s0 + $0x60] sm:$0xff]
    %v34 = vld [vmem:[%s0 + $0x68] sm:$0xff]
    %v35 = vld [vmem:[%s0 + $0x70] sm:$0xff]
    %v36 = vld [vmem:[%s0 + $0x78] sm:$0xff]
    %v37 = vld [vmem:[%s1] sm:$0xff]
    %v38 = vld [vmem:[%s1 + $0x8] sm:$0xff]
    %v39 = vld [vmem:[%s1 + $0x10] sm:$0xff]
    %v40 = vld [vmem:[%s1 + $0x18] sm:$0x3f]
    %v41 = vld [vmem:[%s2] sm:$0x1]
    %v43 = vlaneseq
    %v44 = vshrl.u32 %v43, 7
    %v45 = vsub.s32 0, %v44
    %v46 = vrot.slane %v41, %v45
    %vm48 = vcmask 244736
    %v50 = vsel %vm48, %v21, 0
    %v53 = vsel %vm48, %v22, 0
    %v56 = vsel %vm48, %v23, 0
    %v59 = vsel %vm48, %v24, 0
    %v62 = vsel %vm48, %v25, 0
    %v65 = vsel %vm48, %v26, 0
    %v68 = vsel %vm48, %v27, 0
    %v71 = vsel %vm48, %v28, 0
    %v74 = vsel %vm48, %v29, 0
    %v77 = vsel %vm48, %v30, 0
    %v80 = vsel %vm48, %v31, 0
    %v83 = vsel %vm48, %v32, 0
    %v86 = vsel %vm48, %v33, 0
    %v89 = vsel %vm48, %v34, 0
    %v92 = vsel %vm48, %v35, 0
    %v95 = vsel %vm48, %v36, 0
    %vm97 = vcmask 1045504
    %v99 = vsel %vm97, %v40, 0
    %101 = vmatprep.subr.mxu0 0.0
    %102 = vmatpush1.msra.mxu0 %v37
    %103 = vmatprep.subr.mxu0 0.0
    %104 = vmatpush1.msra.mxu0 %v38
    %105 = vmatprep.subr.mxu0 0.0
    %106 = vmatpush1.msra.mxu0 %v39
    %107 = vmatprep.subr.mxu0 0.0
    %108 = vmatpush1.msra.mxu0 %v99
    %109 = vmatprep.subr.mxu0 0.0
    %110 = vmatpush1.msra.mxu0 0.0
    %111 = vmatprep.subr.mxu0 0.0
    %112 = vmatpush1.msra.mxu0 0.0
    %113 = vmatprep.subr.mxu0 0.0
    %114 = vmatpush1.msra.mxu0 0.0
    %115 = vmatprep.subr.mxu0 0.0
    %116 = vmatpush1.msra.mxu0 0.0
    %117 = vmatprep.subr.mxu0 0.0
    %118 = vmatpush1.msra.mxu0 0.0
    %119 = vmatprep.subr.mxu0 0.0
    %120 = vmatpush1.msra.mxu0 0.0
    %121 = vmatprep.subr.mxu0 0.0
    %122 = vmatpush1.msra.mxu0 0.0
    %123 = vmatprep.subr.mxu0 0.0
    %124 = vmatpush1.msra.mxu0 0.0
    %125 = vmatprep.subr.mxu0 0.0
    %126 = vmatpush1.msra.mxu0 0.0
    %127 = vmatprep.subr.mxu0 0.0
    %128 = vmatpush1.msra.mxu0 0.0
    %129 = vmatprep.subr.mxu0 0.0
    %130 = vmatpush1.msra.mxu0 0.0
    %131 = vmatprep.subr.mxu0 0.0
    %132 = vmatpush1.msra.mxu0 0.0
    %133 = vmatprep.subr.mxu0 0.0
    %134 = vmatpush1.msra.mxu0 0.0
    %135 = vmatprep.subr.mxu0 0.0
    %136 = vmatpush1.msra.mxu0 0.0
    %137 = vmatprep.subr.mxu0 0.0
    %138 = vmatpush1.msra.mxu0 0.0
    %139 = vmatprep.subr.mxu0 0.0
    %140 = vmatpush1.msra.mxu0 0.0
    %141 = vmatprep.subr.mxu0 0.0
    %142 = vmatpush1.msra.mxu0 0.0
    %143 = vmatprep.subr.mxu0 0.0
    %144 = vmatpush1.msra.mxu0 0.0
    %145 = vmatprep.subr.mxu0 0.0
    %146 = vmatpush1.msra.mxu0 0.0
    %147 = vmatprep.subr.mxu0 0.0
    %148 = vmatpush1.msra.mxu0 0.0
    %149 = vmatprep.subr.mxu0 0.0
    %150 = vmatpush1.msra.mxu0 0.0
    %151 = vmatprep.subr.mxu0 0.0
    %152 = vmatpush1.msra.mxu0 0.0
    %153 = vmatprep.subr.mxu0 0.0
    %154 = vmatpush1.msra.mxu0 0.0
    %155 = vmatprep.subr.mxu0 0.0
    %156 = vmatpush1.msra.mxu0 0.0
    %157 = vmatprep.subr.mxu0 0.0
    %158 = vmatpush1.msra.mxu0 0.0
    %159 = vmatprep.subr.mxu0 0.0
    %160 = vmatpush1.msra.mxu0 0.0
    %161 = vmatprep.subr.mxu0 0.0
    %162 = vmatpush1.msra.mxu0 0.0
    %163 = vmatprep.subr.mxu0 0.0
    %164 = vmatpush1.msra.mxu0 0.0
    %165 = vmatprep.mubr.f32.mxu0 0.0
    %166 = vmatmul.mubr.f32.gmra.mrb[0].mxu0 %v50
    %v167 = vpop.f32.mrb[0].mxu0
    %v168 = vadd.f32 %v46, %v167
    %v169 = vpop.f32.mrb[0].mxu0
    %170 = vmatprep.mubr.f32.mxu0 0.0
    %171 = vmatmul.mubr.f32.gmra.mrb[0].mxu0 %v53
    %v172 = vpop.f32.mrb[0].mxu0
    %v173 = vadd.f32 %v46, %v172
    %v174 = vpop.f32.mrb[0].mxu0
    %175 = vmatprep.mubr.f32.mxu0 0.0
    %176 = vmatmul.mubr.f32.gmra.mrb[0].mxu0 %v56
    %v177 = vpop.f32.mrb[0].mxu0
    %v178 = vadd.f32 %v46, %v177
    %v179 = vpop.f32.mrb[0].mxu0
    %180 = vmatprep.mubr.f32.mxu0 0.0
    %181 = vmatmul.mubr.f32.gmra.mrb[0].mxu0 %v59
    %v182 = vpop.f32.mrb[0].mxu0
    %v183 = vadd.f32 %v46, %v182
    %v184 = vpop.f32.mrb[0].mxu0
    %185 = vmatprep.mubr.f32.mxu0 0.0
    %186 = vmatmul.mubr.f32.gmra.mrb[0].mxu0 %v62
    %v187 = vpop.f32.mrb[0].mxu0
    %v188 = vadd.f32 %v46, %v187
    %v189 = vpop.f32.mrb[0].mxu0
    %190 = vmatprep.mubr.f32.mxu0 0.0
    %191 = vmatmul.mubr.f32.gmra.mrb[0].mxu0 %v65
    %v192 = vpop.f32.mrb[0].mxu0
    %v193 = vadd.f32 %v46, %v192
    %v194 = vpop.f32.mrb[0].mxu0
    %195 = vmatprep.mubr.f32.mxu0 0.0
    %196 = vmatmul.mubr.f32.gmra.mrb[0].mxu0 %v68
    %v197 = vpop.f32.mrb[0].mxu0
    %v198 = vadd.f32 %v46, %v197
    %v199 = vpop.f32.mrb[0].mxu0
    %200 = vmatprep.mubr.f32.mxu0 0.0
    %201 = vmatmul.mubr.f32.gmra.mrb[0].mxu0 %v71
    %v202 = vpop.f32.mrb[0].mxu0
    %v203 = vadd.f32 %v46, %v202
    %v204 = vpop.f32.mrb[0].mxu0
    %205 = vmatprep.mubr.f32.mxu0 0.0
    %206 = vmatmul.mubr.f32.gmra.mrb[0].mxu0 %v74
    %v207 = vpop.f32.mrb[0].mxu0
    %v208 = vadd.f32 %v46, %v207
    %v209 = vpop.f32.mrb[0].mxu0
    %210 = vmatprep.mubr.f32.mxu0 0.0
    %211 = vmatmul.mubr.f32.gmra.mrb[0].mxu0 %v77
    %v212 = vpop.f32.mrb[0].mxu0
    %v213 = vadd.f32 %v46, %v212
    %v214 = vpop.f32.mrb[0].mxu0
    %215 = vmatprep.mubr.f32.mxu0 0.0
    %216 = vmatmul.mubr.f32.gmra.mrb[0].mxu0 %v80
    %v217 = vpop.f32.mrb[0].mxu0
    %v218 = vadd.f32 %v46, %v217
    %v219 = vpop.f32.mrb[0].mxu0
    %220 = vmatprep.mubr.f32.mxu0 0.0
    %221 = vmatmul.mubr.f32.gmra.mrb[0].mxu0 %v83
    %v222 = vpop.f32.mrb[0].mxu0
    %v223 = vadd.f32 %v46, %v222
    %v224 = vpop.f32.mrb[0].mxu0
    %225 = vmatprep.mubr.f32.mxu0 0.0
    %226 = vmatmul.mubr.f32.gmra.mrb[0].mxu0 %v86
    %v227 = vpop.f32.mrb[0].mxu0
    %v228 = vadd.f32 %v46, %v227
    %v229 = vpop.f32.mrb[0].mxu0
    %230 = vmatprep.mubr.f32.mxu0 0.0
    %231 = vmatmul.mubr.f32.gmra.mrb[0].mxu0 %v89
    %v232 = vpop.f32.mrb[0].mxu0
    %v233 = vadd.f32 %v46, %v232
    %v234 = vpop.f32.mrb[0].mxu0
    %235 = vmatprep.mubr.f32.mxu0 0.0
    %236 = vmatmul.mubr.f32.gmra.mrb[0].mxu0 %v92
    %v237 = vpop.f32.mrb[0].mxu0
    %v238 = vadd.f32 %v46, %v237
    %v239 = vpop.f32.mrb[0].mxu0
    %240 = vmatprep.mubr.f32.mxu0 0.0
    %241 = vmatmul.mubr.f32.gmra.mrb[0].mxu0 %v95
    %v242 = vpop.f32.mrb[0].mxu0
    %v243 = vadd.f32 %v46, %v242
    %v244 = vpop.f32.mrb[0].mxu0
    %245 = vdwg.mxu0
    %v246 = vmax.f32 %v168, 0.0
    %v247 = vmax.f32 %v173, 0.0
    %v248 = vmax.f32 %v178, 0.0
    %v249 = vmax.f32 %v183, 0.0
    %v250 = vmax.f32 %v188, 0.0
    %v251 = vmax.f32 %v193, 0.0
    %v252 = vmax.f32 %v198, 0.0
    %v253 = vmax.f32 %v203, 0.0
    %v254 = vmax.f32 %v208, 0.0
    %v255 = vmax.f32 %v213, 0.0
    %v256 = vmax.f32 %v218, 0.0
    %v257 = vmax.f32 %v223, 0.0
    %v258 = vmax.f32 %v228, 0.0
    %v259 = vmax.f32 %v233, 0.0
    %v260 = vmax.f32 %v238, 0.0
    %v261 = vmax.f32 %v243, 0.0
    %v262 = vld [vmem:[%s3] sm:$0xff]
    %v263 = vld [vmem:[%s3 + $0x8] sm:$0xff]
    %v264 = vld [vmem:[%s3 + $0x10] sm:$0xff]
    %v265 = vld [vmem:[%s3 + $0x18] sm:$0xff]
    %v266 = vld [vmem:[%s3 + $0x20] sm:$0xff]
    %v267 = vld [vmem:[%s3 + $0x28] sm:$0xff]
    %v268 = vld [vmem:[%s3 + $0x30] sm:$0xff]
    %v269 = vld [vmem:[%s3 + $0x38] sm:$0xff]
    %v270 = vld [vmem:[%s3 + $0x40] sm:$0xff]
    %v271 = vld [vmem:[%s3 + $0x48] sm:$0xff]
    %v272 = vld [vmem:[%s3 + $0x50] sm:$0xff]
    %v273 = vld [vmem:[%s3 + $0x58] sm:$0xff]
    %v274 = vld [vmem:[%s3 + $0x60] sm:$0xff]
    %v275 = vld [vmem:[%s3 + $0x68] sm:$0xff]
    %v276 = vld [vmem:[%s3 + $0x70] sm:$0xff]
    %v277 = vld [vmem:[%s3 + $0x78] sm:$0xff]
    %v278 = vld [vmem:[%s4] sm:$0x3]
    %280 = vset.pattern.permute.xlu0 0
    %281 = vperm.xlu0 %280, %v278
    %v282 = vpop.permute.xlu0 %281
    %284 = vxpose.xlu0.b32.start [1/16] %v262, 128
    %285 = vxpose.xlu0.b32.cont [2/16] %v263, 128
    %286 = vxpose.xlu0.b32.cont [3/16] %v264, 128
    %287 = vxpose.xlu0.b32.cont [4/16] %v265, 128
    %288 = vxpose.xlu0.b32.cont [5/16] %v266, 128
    %289 = vxpose.xlu0.b32.cont [6/16] %v267, 128
    %290 = vxpose.xlu0.b32.cont [7/16] %v268, 128
    %291 = vxpose.xlu0.b32.cont [8/16] %v269, 128
    %292 = vxpose.xlu0.b32.cont [9/16] %v270, 128
    %293 = vxpose.xlu0.b32.cont [10/16] %v271, 128
    %294 = vxpose.xlu0.b32.cont [11/16] %v272, 128
    %295 = vxpose.xlu0.b32.cont [12/16] %v273, 128
    %296 = vxpose.xlu0.b32.cont [13/16] %v274, 128
    %297 = vxpose.xlu0.b32.cont [14/16] %v275, 128
    %298 = vxpose.xlu0.b32.cont [15/16] %v276, 128
    %299 = vxpose.xlu0.b32.end [16/16] %v277, 128
    %v300 = vpop.trf.xlu0
    %v301 = vpop.trf.xlu0
    %v302 = vpop.trf.xlu0
    %v303 = vpop.trf.xlu0
    %v304 = vpop.trf.xlu0
    %v305 = vpop.trf.xlu0
    %v306 = vpop.trf.xlu0
    %v307 = vpop.trf.xlu0
    %v308 = vpop.trf.xlu0
    %v309 = vpop.trf.xlu0
    %v310 = vpop.trf.xlu0
    %v311 = vpop.trf.xlu0
    %v312 = vpop.trf.xlu0
    %v313 = vpop.trf.xlu0
    %v314 = vpop.trf.xlu0
    %v315 = vpop.trf.xlu0
    %316 = vmatprep.subr.mxu0 0.0
    %317 = vmatpush1.xpose.msra.mxu0 %v246
    %318 = vmatprep.subr.mxu0 0.0
    %319 = vmatpush1.xpose.msra.mxu0 %v247
    %320 = vmatprep.subr.mxu0 0.0
    %321 = vmatpush1.xpose.msra.mxu0 %v248
    %322 = vmatprep.subr.mxu0 0.0
    %323 = vmatpush1.xpose.msra.mxu0 %v249
    %324 = vmatprep.subr.mxu0 0.0
    %325 = vmatpush1.xpose.msra.mxu0 %v250
    %326 = vmatprep.subr.mxu0 0.0
    %327 = vmatpush1.xpose.msra.mxu0 %v251
    %328 = vmatprep.subr.mxu0 0.0
    %329 = vmatpush1.xpose.msra.mxu0 %v252
    %330 = vmatprep.subr.mxu0 0.0
    %331 = vmatpush1.xpose.msra.mxu0 %v253
    %332 = vmatprep.subr.mxu0 0.0
    %333 = vmatpush1.xpose.msra.mxu0 %v254
    %334 = vmatprep.subr.mxu0 0.0
    %335 = vmatpush1.xpose.msra.mxu0 %v255
    %336 = vmatprep.subr.mxu0 0.0
    %337 = vmatpush1.xpose.msra.mxu0 %v256
    %338 = vmatprep.subr.mxu0 0.0
    %339 = vmatpush1.xpose.msra.mxu0 %v257
    %340 = vmatprep.subr.mxu0 0.0
    %341 = vmatpush1.xpose.msra.mxu0 %v258
    %342 = vmatprep.subr.mxu0 0.0
    %343 = vmatpush1.xpose.msra.mxu0 %v259
    %344 = vmatprep.subr.mxu0 0.0
    %345 = vmatpush1.xpose.msra.mxu0 %v260
    %346 = vmatprep.subr.mxu0 0.0
    %347 = vmatpush1.xpose.msra.mxu0 %v261
    %348 = vmatprep.subr.mxu0 0.0
    %349 = vmatpush1.xpose.msra.mxu0 0.0
    %350 = vmatprep.subr.mxu0 0.0
    %351 = vmatpush1.xpose.msra.mxu0 0.0
    %352 = vmatprep.subr.mxu0 0.0
    %353 = vmatpush1.xpose.msra.mxu0 0.0
    %354 = vmatprep.subr.mxu0 0.0
    %355 = vmatpush1.xpose.msra.mxu0 0.0
    %356 = vmatprep.subr.mxu0 0.0
    %357 = vmatpush1.xpose.msra.mxu0 0.0
    %358 = vmatprep.subr.mxu0 0.0
    %359 = vmatpush1.xpose.msra.mxu0 0.0
    %360 = vmatprep.subr.mxu0 0.0
    %361 = vmatpush1.xpose.msra.mxu0 0.0
    %362 = vmatprep.subr.mxu0 0.0
    %363 = vmatpush1.xpose.msra.mxu0 0.0
    %364 = vmatprep.subr.mxu0 0.0
    %365 = vmatpush1.xpose.msra.mxu0 0.0
    %366 = vmatprep.subr.mxu0 0.0
    %367 = vmatpush1.xpose.msra.mxu0 0.0
    %368 = vmatprep.subr.mxu0 0.0
    %369 = vmatpush1.xpose.msra.mxu0 0.0
    %370 = vmatprep.subr.mxu0 0.0
    %371 = vmatpush1.xpose.msra.mxu0 0.0
    %372 = vmatprep.subr.mxu0 0.0
    %373 = vmatpush1.xpose.msra.mxu0 0.0
    %374 = vmatprep.subr.mxu0 0.0
    %375 = vmatpush1.xpose.msra.mxu0 0.0
    %376 = vmatprep.subr.mxu0 0.0
    %377 = vmatpush1.xpose.msra.mxu0 0.0
    %378 = vmatprep.subr.mxu0 0.0
    %379 = vmatpush1.xpose.msra.mxu0 0.0
    %380 = vmatprep.mubr.f32.mxu0 0.0
    %381 = vmatmul.mubr.f32.gmra.mrb[0].mxu0 %v300
    %v382 = vpop.f32.mrb[0].mxu0
    %v383 = vadd.f32 %v282, %v382
    %v384 = vpop.f32.mrb[0].mxu0
    %385 = vdwg.mxu0
    %386 = vst [vmem:[#allocation2] sm:$0x3] %v383
    // Predicated region
    $region22: #{tpu_custom_call.1} parent=1 // pred_check
      _
    $region23: #{tpu_custom_call.1} parent=1 // pred_check_branch
      %388 = sbr.rel (0) target = $region25
    $region24: #{tpu_custom_call.1} parent=1 // pred_region
      %s390 = ssub.s32 32, 32
      %391 = vsyncadd [#allocation3], %s390
      %s393 = sshll.u32 [#allocation2], 4
      %s394 = int_to_ptr.vmem [resolvable:$true] %s393
      %396 = dma.vmem_to_hbm [thread:$0]  %s394, 32, %s5, [#allocation3]
    $region25: #{tpu_custom_call.1} parent=1 // pred_fallthru
      _
    // Predicated region
    $region26: #{tpu_custom_call.1} parent=1 // pred_check
      _
    $region27: #{tpu_custom_call.1} parent=1 // pred_check_branch
      %398 = sbr.rel (0) target = $region29
    $region28: #{tpu_custom_call.1} parent=1 // pred_region
      %399 = dma.done [#allocation3], 32
    $region29: #{tpu_custom_call.1} parent=1 // pred_fallthru
      _
    %400 = vsyncpa [#allocation3], 1

</llo_original>
